<compile_context>
chip_gen: v6e
topology: v6e:2x2x1
jax: 0.10.0
libtpu: 0.0.40
codegen_flags: <defaults>
</compile_context>

<pallas_src>
import functools
import math

import jax
import jax.numpy as jnp
from jax import lax
from jax.experimental import pallas as pl
from jax.experimental.pallas import tpu as pltpu

LRELU_SLOPE = 0.1

# (C_in, C_out, kernel, stride, pad) — matches the PyTorch module (get_padding(5,1)=2)
LAYER_CFG = [
    (1, 32, 5, 3, 2),
    (32, 128, 5, 3, 2),
    (128, 512, 5, 3, 2),
    (512, 1024, 5, 3, 2),
    (1024, 1024, 5, 1, 2),
]
POST_CFG = (1024, 1, 3, 1, 1)

_MAX_TM = 512                      # rows (B*W*H_out) per tile
# VMEM budget (worst layer, tm=512): resident W 5120x1024 bf16 = 10 MiB (x2 bufs)
# + 2 x (512 x 5120) bf16 LHS = 10 MiB + 2 x (512 x 1024) bf16 out = 2 MiB  ~= 32 MiB.
_VMEM_LIMIT_BYTES = 48 * 1024 * 1024


def _round_up(x, m):
    return (x + m - 1) // m * m


# ---------------------------------------------------------------------------
# Pallas kernel: matmul (full-K, full-Cout, VMEM-resident weight) + bias
#                + optional leaky ReLU
# ---------------------------------------------------------------------------
def _matmul_bias_kernel(x_ref, w_ref, b_ref, o_ref, *, apply_lrelu):
    # x_ref: (tm, K) bf16        w_ref: (K, Cout_pad) bf16 (constant block, resident)
    # b_ref: (1, Cout_pad) f32   o_ref: (tm, Cout_pad) bf16 (hidden) / f32 (conv_post)
    y = jnp.dot(x_ref[...], w_ref[...], preferred_element_type=jnp.float32)
    y = y + b_ref[...]
    if apply_lrelu:
        y = jnp.where(y >= 0.0, y, LRELU_SLOPE * y)
    o_ref[...] = y.astype(o_ref.dtype)


def _fused_matmul(cols, w_pad, b_pad, apply_lrelu, out_dtype):
    """(M, K) bf16 @ (K, Cout_pad) bf16 + bias [+ leaky ReLU], 1-D grid over M tiles."""
    M, K = cols.shape
    Kw, Cout_pad = w_pad.shape
    assert K == Kw

    tm = min(_MAX_TM, _round_up(M, 16))            # bf16 sublane packing = 16
    if M > 16 and _round_up(M, tm) // tm < 2:      # >= 2 parallel steps (v7x: 2 TCs)
        tm = _round_up((M + 1) // 2, 16)
    M_pad = _round_up(M, tm)
    if M_pad != M:
        cols = jnp.pad(cols, ((0, M_pad - M), (0, 0)))

    out = pl.pallas_call(
        functools.partial(_matmul_bias_kernel, apply_lrelu=apply_lrelu),
        grid=(M_pad // tm,),
        in_specs=[
            # full-extent K block (exempt from 128-lane divisibility rule)
            pl.BlockSpec((tm, K), lambda i: (i, 0)),
            # constant block index -> weight DMA'd once, VMEM-resident across M
            pl.BlockSpec((K, Cout_pad), lambda i: (0, 0)),
            pl.BlockSpec((1, Cout_pad), lambda i: (0, 0)),
        ],
        out_specs=pl.BlockSpec((tm, Cout_pad), lambda i: (i, 0)),
        out_shape=jax.ShapeDtypeStruct((M_pad, Cout_pad), out_dtype),
        compiler_params=pltpu.CompilerParams(
            dimension_semantics=("parallel",),
            vmem_limit_bytes=_VMEM_LIMIT_BYTES),
    )(cols, w_pad, b_pad)
    return out[:M]


def _conv_k1_layer(x, p, apply_lrelu, out_dtype):
    """Conv2d with kernel (ks,1), stride (stride,1), padding (pad,0) on NWHC input."""
    B, W, H, Cin = x.shape
    ks, stride, pad, cout = p["ks"], p["stride"], p["pad"], p["cout"]
    xb = x.astype(jnp.bfloat16)                                 # no-op for hidden layers
    xp = jnp.pad(xb, ((0, 0), (0, 0), (pad, pad), (0, 0)))      # zero pad along frames
    Hp = H + 2 * pad
    H_out = (Hp - ks) // stride + 1
    # im2col at the *natural* K (no HBM K padding), bf16.
    # TODO(synk): fuse the im2col gather into the kernel (frame-window BlockSpec +
    # in-kernel strided tap loop) to remove the remaining ks-x activation blow-up.
    cols = jnp.stack(
        [xp[:, :, k: k + stride * (H_out - 1) + 1: stride, :] for k in range(ks)],
        axis=3,
    )                                                           # (B, W, H_out, ks, Cin)
    M = B * W * H_out
    cols = cols.reshape(M, ks * Cin)                            # row index = k*Cin + ci

    out = _fused_matmul(cols, p["w_pad"], p["b_pad"], apply_lrelu, out_dtype)
    return out[:, :cout].reshape(B, W, H_out, cout)


# ---------------------------------------------------------------------------
# Forward pass (mirrors PeriodDiscriminator.forward)
# ---------------------------------------------------------------------------
def period_discriminator_forward(x, params, period):
    """x: (B, 1, T) float32 waveform. Returns (scores (B, H*W), list of NCHW feats)."""
    b, c, t = x.shape
    if t % period != 0:
        n_pad = period - t % period
        x = jnp.pad(x, ((0, 0), (0, 0), (0, n_pad)), mode="reflect")
        t = t + n_pad
    x = x.reshape(b, c, t // period, period)        # NCHW view, W == period
    x = jnp.transpose(x, (0, 3, 2, 1))              # -> NWHC (channels on lanes)
    feats = []
    for p in params[:-1]:
        x = _conv_k1_layer(x, p, apply_lrelu=True, out_dtype=jnp.bfloat16)
        # NCHW copy only for the returned features (PyTorch API parity); kept bf16
        # to halve the extra HBM pass; the compute path stays NWHC.
        feats.append(jnp.transpose(x, (0, 3, 2, 1)))
    x = _conv_k1_layer(x, params[-1], apply_lrelu=False, out_dtype=jnp.float32)
    x_nchw = jnp.transpose(x, (0, 3, 2, 1))
    feats.append(x_nchw)
    scores = x_nchw.reshape(b, -1)                  # torch.flatten(x, 1, -1)
    return scores, feats


# ---------------------------------------------------------------------------
# Deterministic synthetic parameters
# ---------------------------------------------------------------------------
def init_params(key):
    params = []
    for (cin, cout, ks, stride, pad) in LAYER_CFG + [POST_CFG]:
        key, kw, kb = jax.random.split(key, 3)
        # PyTorch-layout weight (Cout, Cin, K, 1) and bias (Cout,)
        w = jax.random.normal(kw, (cout, cin, ks, 1), jnp.float32) * (
            0.5 / math.sqrt(cin * ks)
        )
        b = jax.random.normal(kb, (cout,), jnp.float32) * 0.01
        # matmul layout: (K, Cout_pad), row index = k*Cin + ci (matches im2col);
        # only Cout is padded (to 128 lanes); K stays at its natural size.
        K = ks * cin
        Cout_pad = _round_up(cout, 128)
        w_mat = jnp.transpose(w[..., 0], (2, 1, 0)).reshape(K, cout)
        w_pad = jnp.pad(w_mat.astype(jnp.bfloat16), ((0, 0), (0, Cout_pad - cout)))
        b_pad = jnp.pad(b, (0, Cout_pad - cout)).reshape(1, Cout_pad)
        params.append(dict(w=w, b=b, w_pad=w_pad, b_pad=b_pad,
                           cout=cout, ks=ks, stride=stride, pad=pad))
    return params


# ---------------------------------------------------------------------------
# Pure-JAX reference (bf16 conv inputs + f32 accumulation, mirroring the kernel)
# ---------------------------------------------------------------------------
def _ref_forward(x, params, period):
    b, c, t = x.shape
    if t % period != 0:
        n_pad = period - t % period
        x = jnp.pad(x, ((0, 0), (0, 0), (0, n_pad)), mode="reflect")
        t = t + n_pad
    x = x.reshape(b, c, t // period, period)
    feats = []
    for i, p in enumerate(params):
        y = lax.conv_general_dilated(
            x.astype(jnp.bfloat16),
            p["w"].astype(jnp.bfloat16),
            window_strides=(p["stride"], 1),
            padding=((p["pad"], p["pad"]), (0, 0)),
            dimension_numbers=("NCHW", "OIHW", "NCHW"),
            preferred_element_type=jnp.float32,
        ) + p["b"][None, :, None, None]
        if i < len(params) - 1:
            y = jnp.where(y >= 0.0, y, LRELU_SLOPE * y)
        x = y
        feats.append(x)
    return x.reshape(b, -1), feats


if __name__ == "__main__":
    key = jax.random.PRNGKey(0)
    key, xkey, pkey = jax.random.split(key, 3)

    period = 4
    B, C, T = 2, 1, 62                       # T % period != 0 -> exercises reflect pad
    x = jax.random.normal(xkey, (B, C, T), jnp.float32)
    params = init_params(pkey)

    scores, feats = period_discriminator_forward(x, params, period)
    scores = jax.block_until_ready(scores)
    feats = [jax.block_until_ready(f) for f in feats]

    ref_scores, ref_feats = _ref_forward(x, params, period)

    ok = scores.shape == ref_scores.shape and bool(
        jnp.allclose(scores, ref_scores, rtol=1e-2, atol=1e-2)
    )
    assert len(feats) == len(ref_feats) == 6
    for f, rf in zip(feats, ref_feats):
        ok = ok and (f.shape == rf.shape) and bool(
            jnp.allclose(f.astype(jnp.float32), rf, rtol=1e-2, atol=1e-2)
        )

    if not ok:
        raise RuntimeError("Pallas PeriodDiscriminator mismatch vs. JAX reference")
    print("KERNEL_OK")
</pallas_src>

<mosaic_0001>
module attributes {stable_mosaic.version = 11 : i64} {
  func.func @_matmul_bias_kernel(%arg0: i32, %arg1: memref<32x5xbf16, #tpu.memory_space<vmem>>, %arg2: memref<5x128xbf16, #tpu.memory_space<vmem>>, %arg3: memref<1x128xf32, #tpu.memory_space<vmem>>, %arg4: memref<32x128xbf16, #tpu.memory_space<vmem>>) attributes {dimension_semantics = [#tpu.dimension_semantics<parallel>], iteration_bounds = array<i64: 2>, scalar_prefetch = 0 : i64, scratch_operands = 0 : i64, tpu.core_type = #tpu.core_type<tc>, window_params = [{transform_indices = @transform_0, window_bounds = array<i64: 32, 5>}, {pipeline_mode = #tpu.pipeline_mode<synchronous>, transform_indices = @transform_1, window_bounds = array<i64: 5, 128>}, {pipeline_mode = #tpu.pipeline_mode<synchronous>, transform_indices = @transform_2, window_bounds = array<i64: 1, 128>}, {transform_indices = @transform_3, window_bounds = array<i64: 32, 128>}]} {
    %c0 = arith.constant 0 : index
    %c0_0 = arith.constant 0 : index
    %0 = vector.load %arg1[%c0, %c0_0] : memref<32x5xbf16, #tpu.memory_space<vmem>>, vector<32x5xbf16>
    %c0_1 = arith.constant 0 : index
    %c0_2 = arith.constant 0 : index
    %1 = vector.load %arg2[%c0_1, %c0_2] : memref<5x128xbf16, #tpu.memory_space<vmem>>, vector<5x128xbf16>
    %cst = arith.constant dense<0.000000e+00> : vector<32x128xf32>
    %2 = tpu.matmul %0, %1, %cst {dimension_numbers = #tpu.dot_dimension_numbers<[1], [0], [0], [1], [0, 0, 1, 1], [], []>} : vector<32x5xbf16>, vector<5x128xbf16>, vector<32x128xf32> -> vector<32x128xf32>
    %c0_3 = arith.constant 0 : index
    %c0_4 = arith.constant 0 : index
    %3 = vector.load %arg3[%c0_3, %c0_4] : memref<1x128xf32, #tpu.memory_space<vmem>>, vector<1x128xf32>
    %4 = vector.broadcast %3 : vector<1x128xf32> to vector<32x128xf32>
    %5 = arith.addf %2, %4 : vector<32x128xf32>
    %cst_5 = arith.constant 0.000000e+00 : f32
    %6 = vector.broadcast %cst_5 : f32 to vector<32x128xf32>
    %7 = arith.cmpf oge, %5, %6 : vector<32x128xf32>
    %cst_6 = arith.constant 1.000000e-01 : f32
    %8 = vector.broadcast %cst_6 : f32 to vector<32x128xf32>
    %9 = arith.mulf %8, %5 : vector<32x128xf32>
    %10 = arith.select %7, %5, %9 : vector<32x128xi1>, vector<32x128xf32>
    %11 = arith.truncf %10 : vector<32x128xf32> to vector<32x128xbf16>
    %c0_7 = arith.constant 0 : index
    %c0_8 = arith.constant 0 : index
    %12 = vector.load %arg4[%c0_7, %c0_8] : memref<32x128xbf16, #tpu.memory_space<vmem>>, vector<32x128xbf16>
    tpu.vector_store %arg4[%c0_7, %c0_8], %11 {strides = array<i32>} : memref<32x128xbf16, #tpu.memory_space<vmem>>, vector<32x128xbf16>,
    return
  }
  func.func @transform_0(%arg0: i32) -> (i32, i32) {
    %c0_i32 = arith.constant 0 : i32
    %c0_i32_0 = arith.constant 0 : i32
    return %arg0, %c0_i32 : i32, i32
  }
  func.func @transform_1(%arg0: i32) -> (i32, i32) {
    %c0_i32 = arith.constant 0 : i32
    %c0_i32_0 = arith.constant 0 : i32
    %c0_i32_1 = arith.constant 0 : i32
    return %c0_i32, %c0_i32_0 : i32, i32
  }
  func.func @transform_2(%arg0: i32) -> (i32, i32) {
    %c0_i32 = arith.constant 0 : i32
    %c0_i32_0 = arith.constant 0 : i32
    %c0_i32_1 = arith.constant 0 : i32
    return %c0_i32, %c0_i32_0 : i32, i32
  }
  func.func @transform_3(%arg0: i32) -> (i32, i32) {
    %c0_i32 = arith.constant 0 : i32
    %c0_i32_0 = arith.constant 0 : i32
    return %arg0, %c0_i32 : i32, i32
  }
}

</mosaic_0001>

<llo_original>
// kernel: tpu_custom_call.1
$region0: #{tpu_custom_call.1}
  #allocation0 [shape = 'u32[]', space=smem, size = 0x4, offset = 0x4, fixed_abs, tag = 'smem constant byte address 0x4 - core index']
  #allocation1 [shape = 'u32[144,128]{1,0:T(1,128)}', space=vmem, size = 0x12000, scoped, tag = 'internal scratch']
  %s0 = inlined_call_operand.vmem [shape: bf16[64,5], index: 0, kind: input, shape index: {}]
  %s1 = inlined_call_operand.vmem [shape: bf16[5,128], index: 1, kind: input, shape index: {}]
  %s2 = inlined_call_operand.vmem [shape: f32[1,128], index: 2, kind: input, shape index: {}]
  %s3 = inlined_call_operand.hbm [shape: bf16[64,128], index: 3, kind: output, shape index: {}]
  %s4 = sld [smem:[#allocation0]]
  $region45: #{tpu_custom_call.1} parent=0
    _
  %s6 = ssub.s32 1, %s4
  %s7 = scalar_select 0, %s6, %s4
  $region1: #{tpu_custom_call.1} parent=0
    #allocation2 [shape = 'u8[16384]{0}', space=vmem, size = 0x4000, scoped, tag = 'output window, operand 0']
    #allocation3 [shape = 's32[2]{0}', space=sflag, size = 0x8, scoped, tag = 'scoped memory for tpu_custom_call.1']
    %8 = vsyncpa [#allocation3], 0
    %s9 = scalar_lea.sflag [#allocation3], 1
    %10 = vsyncpa %s9, 0
    loop: start=0, step=1, limit=4
    $region2: #{tpu_custom_call.1} parent=1 // loop_pre_header
      _
    $region3: #{tpu_custom_call.1} parent=1 // loop_header
      %s12 = sphi 0, %s16
      %p13 = scmp.ge.s32.totalorder %s12, 4
      %s22 = sphi 0, %s24
      %s25 = sphi 0, %s22
      %s26 = sphi 0, %s25
      %s42 = sphi 0, %s26
      %s46 = sphi 0, %s46
      %s48 = sphi 0, %s46
      %s49 = sphi 0, %s48
      %s63 = sphi 0, %s49
      %s67 = sphi 0, %s67
      %s69 = sphi 0, %s67
      %s70 = sphi 0, %s69
      %s84 = sphi 0, %s70
      %s90 = sphi 0, %s92
      %s93 = sphi 0, %s90
      %s94 = sphi 0, %s93
      %s110 = sphi 0, %s94
    $region4: #{tpu_custom_call.1} parent=1 // loop_header_branch
      %15 = sbr.rel (%p13) target = $region8
    $region5: #{tpu_custom_call.1} parent=1 // loop_body
      %s17 = ssub.s32 %s12, 1
      %s18 = ssub.s32 %s12, 2
      %s19 = sadd.s32 %s12, 1
      %s20 = ssub.s32 %s12, %s19
      %p21 = scmp.eq.s32.totalorder %s20, 0
      %s23 = sadd.s32 %s22, 1
      %s24 = scalar_select %p21, %s22, %s23
      %p27 = pneg %p21
      %p28 = scmp.eq.s32.totalorder %s12, 1
      %p29 = por %p27, %p28
      %p30 = scmp.ne.s32.totalorder %s22, %s25
      %p31 = scmp.eq.s32.totalorder %s12, 0
      %p32 = por %p30, %p31
      %p33 = scmp.ne.s32.totalorder %s22, %s25
      %p34 = scmp.eq.s32.totalorder %s17, 1
      %p35 = por %p33, %p34
      %p36 = scmp.ne.s32.totalorder %s25, %s26
      %p37 = scmp.eq.s32.totalorder %s17, 0
      %p38 = por %p36, %p37
      %p39 = scmp.ne.s32.totalorder %s25, %s26
      %p40 = scmp.eq.s32.totalorder %s18, 1
      %p41 = por %p39, %p40
      %p43 = scmp.ne.s32.totalorder %s26, %s42
      %p44 = scmp.eq.s32.totalorder %s18, 0
      %p45 = por %p43, %p44
      %s47 = sadd.s32 %s46, 1
      %p50 = scmp.eq.s32.totalorder %s12, 1
      %p51 = scmp.ne.s32.totalorder %s46, %s48
      %p52 = scmp.eq.s32.totalorder %s12, 0
      %p53 = por %p51, %p52
      %p54 = scmp.ne.s32.totalorder %s46, %s48
      %p55 = scmp.eq.s32.totalorder %s17, 1
      %p56 = por %p54, %p55
      %p57 = scmp.ne.s32.totalorder %s48, %s49
      %p58 = scmp.eq.s32.totalorder %s17, 0
      %p59 = por %p57, %p58
      %p60 = scmp.ne.s32.totalorder %s48, %s49
      %p61 = scmp.eq.s32.totalorder %s18, 1
      %p62 = por %p60, %p61
      %p64 = scmp.ne.s32.totalorder %s49, %s63
      %p65 = scmp.eq.s32.totalorder %s18, 0
      %p66 = por %p64, %p65
      %s68 = sadd.s32 %s67, 1
      %p71 = scmp.eq.s32.totalorder %s12, 1
      %p72 = scmp.ne.s32.totalorder %s67, %s69
      %p73 = scmp.eq.s32.totalorder %s12, 0
      %p74 = por %p72, %p73
      %p75 = scmp.ne.s32.totalorder %s67, %s69
      %p76 = scmp.eq.s32.totalorder %s17, 1
      %p77 = por %p75, %p76
      %p78 = scmp.ne.s32.totalorder %s69, %s70
      %p79 = scmp.eq.s32.totalorder %s17, 0
      %p80 = por %p78, %p79
      %p81 = scmp.ne.s32.totalorder %s69, %s70
      %p82 = scmp.eq.s32.totalorder %s18, 1
      %p83 = por %p81, %p82
      %p85 = scmp.ne.s32.totalorder %s70, %s84
      %p86 = scmp.eq.s32.totalorder %s18, 0
      %p87 = por %p85, %p86
      %s88 = ssub.s32 %s12, %s19
      %p89 = scmp.eq.s32.totalorder %s88, 0
      %s91 = sadd.s32 %s90, 1
      %s92 = scalar_select %p89, %s90, %s91
      %p95 = pneg %p89
      %p96 = scmp.eq.s32.totalorder %s12, 1
      %p97 = por %p95, %p96
      %p98 = scmp.ne.s32.totalorder %s90, %s93
      %p99 = scmp.eq.s32.totalorder %s12, 0
      %p100 = por %p98, %p99
      %p101 = scmp.ne.s32.totalorder %s90, %s93
      %p102 = scmp.eq.s32.totalorder %s17, 1
      %p103 = por %p101, %p102
      %p104 = scmp.ne.s32.totalorder %s93, %s94
      %p105 = scmp.eq.s32.totalorder %s17, 0
      %p106 = por %p104, %p105
      %p107 = scmp.ne.s32.totalorder %s93, %s94
      %p108 = scmp.eq.s32.totalorder %s18, 1
      %p109 = por %p107, %p108
      %p111 = scmp.ne.s32.totalorder %s94, %s110
      %p112 = scmp.eq.s32.totalorder %s18, 0
      %p113 = por %p111, %p112
      %p114 = scmp.le.s32.totalorder 1, %s12
      %p115 = scmp.lt.s32.totalorder %s12, 3
      %p116 = pnand %p114, %p115
      %p117 = pneg %p116
      // Predicated region
      $region9: #{tpu_custom_call.1} parent=5 // pred_check
        _
      $region10: #{tpu_custom_call.1} parent=5 // pred_check_branch
        %119 = sbr.rel (%p116) target = $region12
      $region11: #{tpu_custom_call.1} parent=5 // pred_region
        %s120 = ssub.s32 %s12, 1
        // Predicated region
        $region13: #{tpu_custom_call.1} parent=11 // pred_check
          %p121 = pneg %p59
        $region14: #{tpu_custom_call.1} parent=11 // pred_check_branch
          %123 = sbr.rel (%p121) target = $region16
        $region15: #{tpu_custom_call.1} parent=11 // pred_region
          _
        $region16: #{tpu_custom_call.1} parent=11 // pred_fallthru
          _
        // Predicated region
        $region17: #{tpu_custom_call.1} parent=11 // pred_check
          %p124 = pneg %p80
        $region18: #{tpu_custom_call.1} parent=11 // pred_check_branch
          %126 = sbr.rel (%p124) target = $region20
        $region19: #{tpu_custom_call.1} parent=11 // pred_region
          _
        $region20: #{tpu_custom_call.1} parent=11 // pred_fallthru
          _
      $region12: #{tpu_custom_call.1} parent=5 // pred_fallthru
        _
      %p127 = scmp.lt.s32.totalorder %s12, 2
      // Predicated region
      $region21: #{tpu_custom_call.1} parent=5 // pred_check
        %p128 = pneg %p127
      $region22: #{tpu_custom_call.1} parent=5 // pred_check_branch
        %130 = sbr.rel (%p128) target = $region24
      $region23: #{tpu_custom_call.1} parent=5 // pred_region
        // Predicated region
        $region25: #{tpu_custom_call.1} parent=23 // pred_check
          %p131 = pneg %p32
        $region26: #{tpu_custom_call.1} parent=23 // pred_check_branch
          %133 = sbr.rel (%p131) target = $region28
        $region27: #{tpu_custom_call.1} parent=23 // pred_region
          %s134 = smul.u32 4, %s12
          %p135 = scmp.lt.s32.totalorder %s134, 7
          %s136 = scalar_select %p135, %s134, 7
          %s137 = smul.addr %s136, 4
          %s138 = scalar_lea.vmem %s0, %s137
          %s139 = smul.u32 4, %s12
        $region28: #{tpu_custom_call.1} parent=23 // pred_fallthru
          _
      $region24: #{tpu_custom_call.1} parent=5 // pred_fallthru
        _
      %p140 = scmp.le.s32.totalorder 1, %s12
      %p141 = scmp.lt.s32.totalorder %s12, 3
      %p142 = pnand %p140, %p141
      %p143 = pneg %p142
      // Predicated region
      $region29: #{tpu_custom_call.1} parent=5 // pred_check
        _
      $region30: #{tpu_custom_call.1} parent=5 // pred_check_branch
        %145 = sbr.rel (%p142) target = $region32
      $region31: #{tpu_custom_call.1} parent=5 // pred_region
        %s146 = ssub.s32 %s12, 1
        %s147 = smul.u32 4, %s17
        %p148 = scmp.lt.s32.totalorder %s147, 7
        %s149 = scalar_select %p148, %s147, 7
        %s150 = smul.addr %s149, 4
        %s151 = scalar_lea.vmem %s0, %s150
        %p152 = pneg %p38
        %p153 = pneg %p35
        %p154 = pneg %p59
        %p155 = pneg %p56
        %p156 = pneg %p80
        %p157 = pneg %p77
        %p158 = pneg %p106
        %p159 = pneg %p103
        %s160 = sand.u32 %s93, 1
        %s161 = scalar_lea.sflag [#allocation3], %s160
        %s162 = sand.u32 %s93, 1
        %s163 = smul.addr %s162, 16
        %s164 = scalar_lea.vmem [#allocation2], %s163
        %s165 = smul.u32 4, %s17
        %p166 = scmp.lt.s32.totalorder %s165, 7
        %s167 = scalar_select %p166, %s165, 7
        %s168 = smul.addr %s167, 4
        %s169 = scalar_lea.vmem %s0, %s168
        %s170 = smul.u32 4, %s17
        %s171 = smul.u32 4, %s17
        %v173 = vld [vmem:[%s169] sm:$0xf]
        %v174 = vld [vmem:[%s169 + $0x4] sm:$0xf]
        %v175 = vld [vmem:[%s169 + $0x8] sm:$0xf]
        %v176 = vld [vmem:[%s169 + $0xc] sm:$0xf]
        %v177 = vld [vmem:[%s1] sm:$0x7]
        %v178 = vld [vmem:[%s2] sm:$0x1]
        %v180 = vlaneseq
        %v181 = vshrl.u32 %v180, 7
        %v182 = vsub.s32 0, %v181
        %v183 = vrot.slane %v178, %v182
        %v189 = vunpack.c.l.b16 %v173
        %v190 = vunpack.c.l.b16 %v174
        %v191 = vunpack.c.l.b16 %v175
        %v192 = vunpack.c.l.b16 %v176
        %v193 = vpack.c.b16 %v190, %v189
        %v194 = vpack.c.b16 %v192, %v191
        %vm195 = vcmask 39936
        %v197 = vsel %vm195, %v193, 0
        %v200 = vsel %vm195, %v194, 0
        %vm202 = vcmask 1041408
        %vm203 = vcmask 1042432
        %v204 = vsel %vm202, 4294967295, 65535
        %v205 = vsel %vm203, %v204, 0
        %v207 = vand.u32 %v177, %v205
        %209 = vmatprep.subr.bf16.mxu0 0
        %210 = vmatpush1.bf16.msra.mxu0 0
        %211 = vmatprep.subr.bf16.mxu0 0
        %212 = vmatpush1.bf16.msra.mxu0 0
        %213 = vmatprep.subr.bf16.mxu0 0
        %214 = vmatpush1.bf16.msra.mxu0 0
        %215 = vmatprep.subr.bf16.mxu0 0
        %216 = vmatpush1.bf16.msra.mxu0 0
        %217 = vmatprep.subr.bf16.mxu0 0
        %218 = vmatpush1.bf16.msra.mxu0 0
        %219 = vmatprep.subr.bf16.mxu0 0
        %220 = vmatpush1.bf16.msra.mxu0 0
        %221 = vmatprep.subr.bf16.mxu0 0
        %222 = vmatpush1.bf16.msra.mxu0 0
        %223 = vmatprep.subr.bf16.mxu0 0
        %224 = vmatpush1.bf16.msra.mxu0 %v207
        %225 = vmatprep.subr.bf16.mxu0 0
        %226 = vmatpush2.bf16.msra.mxu0 0
        %227 = vmatprep.subr.bf16.mxu0 0
        %228 = vmatpush2.bf16.msra.mxu0 0
        %229 = vmatprep.subr.bf16.mxu0 0
        %230 = vmatpush2.bf16.msra.mxu0 0
        %231 = vmatprep.subr.bf16.mxu0 0
        %232 = vmatpush2.bf16.msra.mxu0 0
        %233 = vmatprep.subr.bf16.mxu0 0
        %234 = vmatpush2.bf16.msra.mxu0 0
        %235 = vmatprep.subr.bf16.mxu0 0
        %236 = vmatpush2.bf16.msra.mxu0 0
        %237 = vmatprep.subr.bf16.mxu0 0
        %238 = vmatpush2.bf16.msra.mxu0 0
        %239 = vmatprep.subr.bf16.mxu0 0
        %240 = vmatpush2.bf16.msra.mxu0 0
        %241 = vmatprep.mubr.bf16.mxu0 0
        %242 = vmatmul.mubr.bf16.gmra.mxu0 %v197
        %v243 = vpop.f32.mrf.mxu0
        %v244 = vadd.f32 %v183, %v243
        %v245 = vpop.f32.mrf.mxu0
        %v246 = vpop.f32.mrf.mxu0
        %v247 = vadd.f32 %v183, %v246
        %v248 = vpop.f32.mrf.mxu0
        %249 = vmatprep.mubr.bf16.mxu0 0
        %250 = vmatmul.mubr.bf16.gmra.mxu0 %v200
        %v251 = vpop.f32.mrf.mxu0
        %v252 = vadd.f32 %v183, %v251
        %v253 = vpop.f32.mrf.mxu0
        %v254 = vpop.f32.mrf.mxu0
        %v255 = vadd.f32 %v183, %v254
        %v256 = vpop.f32.mrf.mxu0
        %257 = vdwg.mxu0
        %vm258 = vcmp.ge.f32.partialorder %v244, 0.0
        %vm259 = vcmp.ge.f32.partialorder %v247, 0.0
        %vm260 = vcmp.ge.f32.partialorder %v252, 0.0
        %vm261 = vcmp.ge.f32.partialorder %v255, 0.0
        %v262 = vmul.f32 %v244, 0.1
        %v263 = vmul.f32 %v247, 0.1
        %v264 = vmul.f32 %v252, 0.1
        %v265 = vmul.f32 %v255, 0.1
        %v266 = vsel %vm258, %v244, %v262
        %v267 = vsel %vm259, %v247, %v263
        %v268 = vsel %vm260, %v252, %v264
        %v269 = vsel %vm261, %v255, %v265
        %v270 = vpack.c.bf16 %v267, %v266
        %v271 = vpack.c.bf16 %v269, %v268
        %v274 = vunpack.c.l.b16 %v270
        %v275 = vunpack.c.h.b16 %v270
        %v276 = vunpack.c.l.b16 %v271
        %v277 = vunpack.c.h.b16 %v271
        %v278 = vpack.c.b16 %v274, %v274
        %v279 = vpack.c.b16 %v275, %v275
        %v280 = vpack.c.b16 %v276, %v276
        %v281 = vpack.c.b16 %v277, %v277
        %286 = vst [vmem:[%s164] sm:$0xf] %v278
        %287 = vst [vmem:[%s164 + $0x4] sm:$0xf] %v279
        %288 = vst [vmem:[%s164 + $0x8] sm:$0xf] %v280
        %289 = vst [vmem:[%s164 + $0xc] sm:$0xf] %v281
        %s290 = sand.u32 %s93, 1
        %s291 = scalar_lea.sflag [#allocation3], %s290
        %s292 = sand.u32 %s93, 1
        %s293 = smul.addr %s292, 16
        %s294 = scalar_lea.vmem [#allocation2], %s293
        // Predicated region
        $region33: #{tpu_custom_call.1} parent=31 // pred_check
          %p295 = pneg %p103
        $region34: #{tpu_custom_call.1} parent=31 // pred_check_branch
          %297 = sbr.rel (%p295) target = $region36
        $region35: #{tpu_custom_call.1} parent=31 // pred_region
          %s298 = smul.u32 4, %s17
          %s300 = ssub.s32 256, 256
          %301 = vsyncadd %s291, %s300
          %s302 = smul.addr %s298, 64
          %s303 = scalar_lea.hbm %s3, %s302
          %s304 = sshll.u32 %s294, 4
          %s305 = int_to_ptr.vmem [resolvable:$true] %s304
          %310 = dma.vmem_to_hbm [thread:$0]  %s305, 256, %s303, %s291, 64, 64, 4
        $region36: #{tpu_custom_call.1} parent=31 // pred_fallthru
          _
      $region32: #{tpu_custom_call.1} parent=5 // pred_fallthru
        _
      %p311 = scmp.le.s32.totalorder 2, %s12
      // Predicated region
      $region37: #{tpu_custom_call.1} parent=5 // pred_check
        %p312 = pneg %p311
      $region38: #{tpu_custom_call.1} parent=5 // pred_check_branch
        %314 = sbr.rel (%p312) target = $region40
      $region39: #{tpu_custom_call.1} parent=5 // pred_region
        %s315 = ssub.s32 %s12, 2
        // Predicated region
        $region41: #{tpu_custom_call.1} parent=39 // pred_check
          %p316 = pneg %p109
        $region42: #{tpu_custom_call.1} parent=39 // pred_check_branch
          %318 = sbr.rel (%p316) target = $region44
        $region43: #{tpu_custom_call.1} parent=39 // pred_region
          %s319 = sand.u32 %s94, 1
          %s320 = scalar_lea.sflag [#allocation3], %s319
          %s321 = sand.u32 %s94, 1
          %s322 = smul.addr %s321, 16
          %s323 = scalar_lea.vmem [#allocation2], %s322
          %324 = dma.done %s320, 256
        $region44: #{tpu_custom_call.1} parent=39 // pred_fallthru
          _
      $region40: #{tpu_custom_call.1} parent=5 // pred_fallthru
        _
    $region6: #{tpu_custom_call.1} parent=1 // loop_footer
      %s16 = sadd.s32 1, %s12
    $region7: #{tpu_custom_call.1} parent=1 // loop_footer_branch
      %11 = sbr.rel target = $region3
    $region8: #{tpu_custom_call.1} parent=1 // loop_exit
      _
    %325 = vsyncpa [#allocation3], 1
    %s326 = scalar_lea.sflag [#allocation3], 1
    %327 = vsyncpa %s326, 1

</llo_original>
